<compile_context>
chip_gen: v6e
topology: v6e:2x2x1
jax: 0.10.0
libtpu: 0.0.40
codegen_flags: <defaults>
</compile_context>

<pallas_src>
import functools

import jax
import jax.numpy as jnp
from jax.experimental import pallas as pl
from jax.experimental.pallas import tpu as pltpu


def _round_up(x, m):
    return ((x + m - 1) // m) * m


def _cdiv(a, b):
    return (a + b - 1) // b


def _base_row_tile():
    """Generation-aware row tile: 256 on v6e (256-wide MXU, 128 MiB VMEM),
    128 on v5e (128-wide MXU) and v7x (64 MiB VMEM)."""
    try:
        kind = jax.devices()[0].device_kind.lower()
    except Exception:
        return 128
    return 256 if "v6" in kind else 128


def _vmem_limit_bytes(block_bytes):
    """Scoped-VMEM request from the per-step block footprint (double-buffered)."""
    est = 2 * int(block_bytes) + (4 << 20)       # pipelining + compiler headroom
    if est <= (12 << 20):
        return None                              # default scoped VMEM is plenty
    return int(min(est, 48 << 20))               # headroom under v7x's 64 MiB


# ---------------------------------------------------------------------------
# Kernel 1: fused multi-head / multi-order linear + ReLU + neighbor-score slab
#   H            = relu(X @ [W_o0 | W_o1] + b)
#   s_neigh[n,i] = LeakyReLU_0.2( f1_i[n] . a_neigh_i )   (block-diag matmul)
#   outputs:  h0  = H[:, :dim_out]                 (order-0 features, f32)
#             fnx = [ f1_heads | s_neigh_i * f1_i ]        (matmul_dtype)
# ---------------------------------------------------------------------------
def _make_transform_kernel(mulhead, dh, dim_out, fnx_dtype):
    def kernel(x_ref, w_ref, b_ref, anbd_ref, h0_ref, fnx_ref):
        h = jnp.dot(x_ref[...], w_ref[...], preferred_element_type=jnp.float32)
        h = jnp.maximum(h + b_ref[...], 0.0)                # (tm1, 2*dim_out) f32
        h0_ref[...] = h[:, :dim_out]                        # order-0 features
        f1 = h[:, dim_out:]                                 # order-1 features
        # neighbor attention scores for all heads via one block-diagonal matmul
        s_n = jnp.dot(f1, anbd_ref[...], preferred_element_type=jnp.float32)
        s_n = jnp.where(s_n > 0, s_n, 0.2 * s_n)            # LeakyReLU(0.2)
        scaled = [s_n[:, i:i + 1] * f1[:, i * dh:(i + 1) * dh]
                  for i in range(mulhead)]
        fnx_ref[...] = jnp.concatenate([f1] + scaled, axis=1).astype(fnx_dtype)
    return kernel


# ---------------------------------------------------------------------------
# Kernel 2: K-tiled attention aggregation + row-norm + head concat + combine
#   w_i @ f1_i == s_self_i * (adj @ f1_i) + adj @ (s_neigh_i * f1_i)
#   -> one wide matmul  acc += adj_blk @ [f1 | s_neigh*f1]  per (row, K) tile,
#      per-head scale/add + row-norm + combine only at the last K step.
# ---------------------------------------------------------------------------
def _make_agg_kernel(mulhead, dh, dim_out, aggr):
    def kernel(adj_ref, fnx_ref, h0_ref, asbd_ref, scale_ref, offset_ref,
               o_ref, acc_ref):
        k = pl.program_id(1)

        @pl.when(k == 0)
        def _init():
            acc_ref[...] = jnp.zeros_like(acc_ref)

        acc_ref[...] += jnp.dot(adj_ref[...], fnx_ref[...],
                                preferred_element_type=jnp.float32)

        @pl.when(k == pl.num_programs(1) - 1)
        def _finalize():
            acc = acc_ref[...]                               # (tm, 2*dim_out) f32
            h0 = h0_ref[...]                                 # (tm, dim_out) f32
            scale = scale_ref[...]
            offset = offset_ref[...]

            # self attention scores for all heads via one block-diagonal matmul
            s_s = jnp.dot(h0, asbd_ref[...], preferred_element_type=jnp.float32)
            s_s = jnp.where(s_s > 0, s_s, 0.2 * s_s)         # LeakyReLU(0.2)

            def rownorm(x, sc, off):
                mean = jnp.mean(x, axis=1, keepdims=True)
                var = jnp.mean((x - mean) ** 2, axis=1, keepdims=True) + 1e-9
                return (x - mean) * sc * jax.lax.rsqrt(var) + off

            blocks0, blocks1 = [], []
            for i in range(mulhead):
                c0 = i * dh
                c1 = dim_out + c0
                agg = (s_s[:, i:i + 1] * acc[:, c0:c0 + dh]
                       + acc[:, c1:c1 + dh])
                blocks0.append(rownorm(h0[:, c0:c0 + dh],
                                       scale[:, c0:c0 + dh],
                                       offset[:, c0:c0 + dh]))
                blocks1.append(rownorm(agg,
                                       scale[:, c1:c1 + dh],
                                       offset[:, c1:c1 + dh]))
            n0 = jnp.concatenate(blocks0, axis=1)
            n1 = jnp.concatenate(blocks1, axis=1)
            if aggr == "mean":
                o_ref[...] = n0 + n1
            else:  # 'concat'
                o_ref[...] = jnp.concatenate([n0, n1], axis=1)
    return kernel


# ---------------------------------------------------------------------------
# Forward pass wrapper (two pallas_call invocations total)
# ---------------------------------------------------------------------------
def attention_aggregator_forward(adj, feat_in, params, *, order, mulhead,
                                 aggr="mean", matmul_dtype=jnp.float32):
    assert order == 1, "fused kernel implements the module default order=1"
    assert aggr in ("mean", "concat")
    # dropout p=0.0 is identity -> skipped

    N, din = feat_in.shape
    dh = params["W"][0][0].shape[1]
    dim_out = mulhead * dh
    ttot = (order + 1) * dim_out
    mh_pad = 8
    assert mulhead <= mh_pad
    mdt = matmul_dtype
    mm_bytes = jnp.dtype(mdt).itemsize

    # ---- pack parameters: columns laid out [o0 h0 | o0 h1 | o1 h0 | o1 h1] ----
    w_cat = jnp.concatenate(
        [params["W"][o][i] for o in range(order + 1) for i in range(mulhead)],
        axis=1).astype(mdt)                                          # (din, ttot)
    b_cat = jnp.concatenate(
        [params["b"][o][i] for o in range(order + 1) for i in range(mulhead)]
    ).reshape(1, ttot)
    sc_cat = jnp.concatenate(
        [params["scale"][o][i] for o in range(order + 1) for i in range(mulhead)]
    ).reshape(1, ttot)
    of_cat = jnp.concatenate(
        [params["offset"][o][i] for o in range(order + 1) for i in range(mulhead)]
    ).reshape(1, ttot)
    # block-diagonal attention projections -> one small matmul scores all heads
    a_sbd = jnp.zeros((dim_out, mh_pad), jnp.float32)
    a_nbd = jnp.zeros((dim_out, mh_pad), jnp.float32)
    for i in range(mulhead):
        a_sbd = a_sbd.at[i * dh:(i + 1) * dh, i].set(params["att"][0][i][0, :dh])
        a_nbd = a_nbd.at[i * dh:(i + 1) * dh, i].set(params["att"][0][i][0, dh:])

    # ---- padding / tiling (no square N_p x N_p blow-up) ----
    base_tm = _base_row_tile()
    # node/column axis (adj lanes, feature rows): 8-aligned when small, else 128
    C = _round_up(N, 8) if N <= 128 else _round_up(N, 128)
    R = _round_up(N, 8)                    # adj/output rows: minimal sublane pad
    # K (reduction) tile over adj columns -> VMEM bounded independent of N
    tk = C if C <= 1024 else next(c for c in (512, 256, 128) if C % c == 0)
    # row tile: >=2 tiles where possible so v7x's two TensorCores both get work
    if R <= 2 * base_tm:
        tm = _round_up(max(8, R // 2), 8)
    else:
        tm = base_tm if C % base_tm == 0 else 128
    # kernel-1 row tile over the C feature rows (always divides C)
    tm1 = C // 2 if C <= 2 * base_tm else (base_tm if C % base_tm == 0 else 128)

    x_p = feat_in.astype(mdt)
    if C != N:
        x_p = jnp.zeros((C, din), mdt).at[:N].set(x_p)
    adj_p = adj.astype(mdt)
    if (R, C) != adj.shape:
        adj_p = jnp.zeros((R, C), mdt).at[:N, :N].set(adj_p)
    # NOTE: padded feature rows are relu(b)-based (nonzero) but every order-1
    # term still flows through the adj matmul whose padded columns are zero,
    # so they contribute nothing.  Padded/ragged output rows are sliced off.

    # ---- Kernel 1: fused linear + ReLU + neighbor-score-scaled feature slab ----
    k1_bytes = (tm1 * din * mm_bytes + din * ttot * mm_bytes + ttot * 4
                + dim_out * mh_pad * 4 + tm1 * dim_out * 4 + tm1 * ttot * mm_bytes)
    h0, fnx = pl.pallas_call(
        _make_transform_kernel(mulhead, dh, dim_out, mdt),
        out_shape=(jax.ShapeDtypeStruct((C, dim_out), jnp.float32),
                   jax.ShapeDtypeStruct((C, ttot), mdt)),
        grid=(C // tm1,),
        in_specs=[
            pl.BlockSpec((tm1, din), lambda i: (i, 0)),
            pl.BlockSpec((din, ttot), lambda i: (0, 0)),
            pl.BlockSpec((1, ttot), lambda i: (0, 0)),
            pl.BlockSpec((dim_out, mh_pad), lambda i: (0, 0)),
        ],
        out_specs=(pl.BlockSpec((tm1, dim_out), lambda i: (i, 0)),
                   pl.BlockSpec((tm1, ttot), lambda i: (i, 0))),
        compiler_params=pltpu.CompilerParams(
            dimension_semantics=("parallel",),
            vmem_limit_bytes=_vmem_limit_bytes(k1_bytes)),
    )(x_p, w_cat, b_cat, a_nbd)

    # ---- Kernel 2: K-tiled attention aggregation + row-norm + combine ----
    out_w = dim_out if aggr == "mean" else ttot
    k2_bytes = (tm * tk * mm_bytes + tk * ttot * mm_bytes + tm * dim_out * 4
                + dim_out * mh_pad * 4 + 2 * ttot * 4 + tm * out_w * 4
                + tm * ttot * 4)                     # + f32 accumulator scratch
    out_p = pl.pallas_call(
        _make_agg_kernel(mulhead, dh, dim_out, aggr),
        out_shape=jax.ShapeDtypeStruct((R, out_w), jnp.float32),
        grid=(_cdiv(R, tm), C // tk),
        in_specs=[
            pl.BlockSpec((tm, tk), lambda i, k: (i, k)),       # adj tile (streamed)
            pl.BlockSpec((tk, ttot), lambda i, k: (k, 0)),     # [f1 | s_n*f1] K tile
            pl.BlockSpec((tm, dim_out), lambda i, k: (i, 0)),  # order-0 row block
            pl.BlockSpec((dim_out, mh_pad), lambda i, k: (0, 0)),
            pl.BlockSpec((1, ttot), lambda i, k: (0, 0)),
            pl.BlockSpec((1, ttot), lambda i, k: (0, 0)),
        ],
        out_specs=pl.BlockSpec((tm, out_w), lambda i, k: (i, 0)),
        scratch_shapes=[pltpu.VMEM((tm, ttot), jnp.float32)],
        compiler_params=pltpu.CompilerParams(
            dimension_semantics=("parallel", "arbitrary"),
            vmem_limit_bytes=_vmem_limit_bytes(k2_bytes)),
    )(adj_p, fnx, h0, a_sbd, sc_cat, of_cat)

    return adj, out_p[:N]


# ---------------------------------------------------------------------------
# Parameter init (deterministic, mirrors the module's __init__ shapes)
# ---------------------------------------------------------------------------
def init_params(key, dim_in, dim_out, order, mulhead):
    dh = dim_out // mulhead
    params = {"W": [], "b": [], "scale": [], "offset": [], "att": []}
    for o in range(order + 1):
        ws, bs, scs, offs, atts = [], [], [], [], []
        for _ in range(mulhead):
            key, k1, k2, k3 = jax.random.split(key, 4)
            lim_w = (6.0 / (dim_in + dh)) ** 0.5              # xavier_uniform
            ws.append(jax.random.uniform(k1, (dim_in, dh), jnp.float32, -lim_w, lim_w))
            lim_b = 1.0 / (dim_in ** 0.5)                     # torch Linear bias default
            bs.append(jax.random.uniform(k2, (dh,), jnp.float32, -lim_b, lim_b))
            scs.append(jnp.ones((dh,), jnp.float32))
            offs.append(jnp.zeros((dh,), jnp.float32))
            if o < order:
                lim_a = (6.0 / (1 + 2 * dh)) ** 0.5           # xavier_uniform on (1, 2*dh)
                atts.append(jax.random.uniform(k3, (1, 2 * dh), jnp.float32, -lim_a, lim_a))
        params["W"].append(ws)
        params["b"].append(bs)
        params["scale"].append(scs)
        params["offset"].append(offs)
        if o < order:
            params["att"].append(atts)
    return params


# ---------------------------------------------------------------------------
# Pure-JAX reference for correctness checking
# ---------------------------------------------------------------------------
def _leaky(x):
    return jnp.where(x > 0, x, 0.2 * x)


def reference_forward(adj, feat_in, params, *, order, mulhead, aggr="mean"):
    feat_partial = []
    for o in range(order + 1):
        heads = []
        for i in range(mulhead):
            heads.append(jnp.maximum(feat_in @ params["W"][o][i] + params["b"][o][i], 0.0))
        feat_partial.append(heads)
    for o in range(1, order + 1):
        for s in range(o):
            for i in range(mulhead):
                fn = feat_partial[o][i]
                fs = feat_partial[o - s - 1][i]
                att = params["att"][o - 1][i]
                dh = fs.shape[1]
                a_s = _leaky(fs @ att[0, :dh])
                a_n = _leaky(fn @ att[0, dh:])
                w = adj * (a_s[:, None] + a_n[None, :])
                feat_partial[o][i] = w @ fn
    for o in range(order + 1):
        for i in range(mulhead):
            x = feat_partial[o][i]
            mean = jnp.mean(x, axis=1, keepdims=True)
            var = jnp.mean((x - mean) ** 2, axis=1, keepdims=True) + 1e-9
            feat_partial[o][i] = (x - mean) * params["scale"][o][i] * jax.lax.rsqrt(var) \
                                 + params["offset"][o][i]
    feat_cat = [jnp.concatenate(h, axis=1) for h in feat_partial]
    if aggr == "mean":
        out = feat_cat[0]
        for o in range(1, len(feat_cat)):
            out = out + feat_cat[o]
    else:
        out = jnp.concatenate(feat_cat, axis=1)
    return out


# ---------------------------------------------------------------------------
if __name__ == "__main__":
    N, dim_in, dim_out = 64, 32, 32
    order, mulhead, aggr = 1, 2, "mean"

    key = jax.random.PRNGKey(0)
    key, kf, ka, km = jax.random.split(key, 4)

    feat_in = jax.random.normal(kf, (N, dim_in), dtype=jnp.float32)
    # dense normalized adjacency: random sparsity mask * positive values / degree
    mask = (jax.random.uniform(km, (N, N)) < 0.2).astype(jnp.float32)
    vals = jax.random.uniform(ka, (N, N), minval=0.5, maxval=1.5) * mask
    deg = jnp.maximum(vals.sum(axis=1, keepdims=True), 1.0)
    adj = vals / deg

    params = init_params(key, dim_in, dim_out, order, mulhead)

    fwd = functools.partial(attention_aggregator_forward,
                            order=order, mulhead=mulhead, aggr=aggr)

    # f32 path: exact check against the pure-JAX reference
    _, feat_out = fwd(adj, feat_in, params)
    feat_out = jax.block_until_ready(feat_out)
    ref = reference_forward(adj, feat_in, params, order=order, mulhead=mulhead, aggr=aggr)
    if not jnp.allclose(feat_out, ref, atol=1e-4, rtol=1e-4):
        raise AssertionError("Pallas output does not match reference (f32)")

    # bf16 MXU-operand path (halves adj HBM traffic at scale): smoke run
    _, feat_bf16 = fwd(adj, feat_in, params, matmul_dtype=jnp.bfloat16)
    feat_bf16 = jax.block_until_ready(feat_bf16)
    if not bool(jnp.isfinite(feat_bf16).all()):
        raise AssertionError("bf16 path produced non-finite values")

    print("KERNEL_OK")
</pallas_src>

<mosaic_0001>
module attributes {stable_mosaic.version = 11 : i64} {
  func.func @kernel(%arg0: i32, %arg1: memref<32x32xf32, #tpu.memory_space<vmem>>, %arg2: memref<32x64xf32, #tpu.memory_space<vmem>>, %arg3: memref<1x64xf32, #tpu.memory_space<vmem>>, %arg4: memref<32x8xf32, #tpu.memory_space<vmem>>, %arg5: memref<32x32xf32, #tpu.memory_space<vmem>>, %arg6: memref<32x64xf32, #tpu.memory_space<vmem>>) attributes {dimension_semantics = [#tpu.dimension_semantics<parallel>], iteration_bounds = array<i64: 2>, scalar_prefetch = 0 : i64, scratch_operands = 0 : i64, tpu.core_type = #tpu.core_type<tc>, window_params = [{transform_indices = @transform_0, window_bounds = array<i64: 32, 32>}, {pipeline_mode = #tpu.pipeline_mode<synchronous>, transform_indices = @transform_1, window_bounds = array<i64: 32, 64>}, {pipeline_mode = #tpu.pipeline_mode<synchronous>, transform_indices = @transform_2, window_bounds = array<i64: 1, 64>}, {pipeline_mode = #tpu.pipeline_mode<synchronous>, transform_indices = @transform_3, window_bounds = array<i64: 32, 8>}, {transform_indices = @transform_4, window_bounds = array<i64: 32, 32>}, {transform_indices = @transform_5, window_bounds = array<i64: 32, 64>}]} {
    %c0 = arith.constant 0 : index
    %c0_0 = arith.constant 0 : index
    %0 = vector.load %arg1[%c0, %c0_0] : memref<32x32xf32, #tpu.memory_space<vmem>>, vector<32x32xf32>
    %c0_1 = arith.constant 0 : index
    %c0_2 = arith.constant 0 : index
    %1 = vector.load %arg2[%c0_1, %c0_2] : memref<32x64xf32, #tpu.memory_space<vmem>>, vector<32x64xf32>
    %cst = arith.constant dense<0.000000e+00> : vector<32x64xf32>
    %2 = tpu.matmul %0, %1, %cst {dimension_numbers = #tpu.dot_dimension_numbers<[1], [0], [0], [1], [0, 0, 1, 1], [], []>} : vector<32x32xf32>, vector<32x64xf32>, vector<32x64xf32> -> vector<32x64xf32>
    %c0_3 = arith.constant 0 : index
    %c0_4 = arith.constant 0 : index
    %3 = vector.load %arg3[%c0_3, %c0_4] : memref<1x64xf32, #tpu.memory_space<vmem>>, vector<1x64xf32>
    %4 = vector.broadcast %3 : vector<1x64xf32> to vector<32x64xf32>
    %5 = arith.addf %2, %4 : vector<32x64xf32>
    %cst_5 = arith.constant 0.000000e+00 : f32
    %6 = vector.broadcast %cst_5 : f32 to vector<32x64xf32>
    %7 = arith.maximumf %5, %6 : vector<32x64xf32>
    %8 = vector.extract_strided_slice %7 {offsets = [0, 0], sizes = [32, 32], strides = [1, 1]} : vector<32x64xf32> to vector<32x32xf32>
    %c0_6 = arith.constant 0 : index
    %c0_7 = arith.constant 0 : index
    %9 = vector.load %arg5[%c0_6, %c0_7] : memref<32x32xf32, #tpu.memory_space<vmem>>, vector<32x32xf32>
    tpu.vector_store %arg5[%c0_6, %c0_7], %8 {strides = array<i32>} : memref<32x32xf32, #tpu.memory_space<vmem>>, vector<32x32xf32>,
    %10 = vector.extract_strided_slice %7 {offsets = [0, 32], sizes = [32, 32], strides = [1, 1]} : vector<32x64xf32> to vector<32x32xf32>
    %c0_8 = arith.constant 0 : index
    %c0_9 = arith.constant 0 : index
    %11 = vector.load %arg4[%c0_8, %c0_9] : memref<32x8xf32, #tpu.memory_space<vmem>>, vector<32x8xf32>
    %cst_10 = arith.constant dense<0.000000e+00> : vector<32x8xf32>
    %12 = tpu.matmul %10, %11, %cst_10 {dimension_numbers = #tpu.dot_dimension_numbers<[1], [0], [0], [1], [0, 0, 1, 1], [], []>} : vector<32x32xf32>, vector<32x8xf32>, vector<32x8xf32> -> vector<32x8xf32>
    %cst_11 = arith.constant 0.000000e+00 : f32
    %13 = vector.broadcast %cst_11 : f32 to vector<32x8xf32>
    %14 = arith.cmpf ogt, %12, %13 : vector<32x8xf32>
    %cst_12 = arith.constant 2.000000e-01 : f32
    %15 = vector.broadcast %cst_12 : f32 to vector<32x8xf32>
    %16 = arith.mulf %15, %12 : vector<32x8xf32>
    %17 = arith.select %14, %12, %16 : vector<32x8xi1>, vector<32x8xf32>
    %18 = vector.extract_strided_slice %17 {offsets = [0, 0], sizes = [32, 1], strides = [1, 1]} : vector<32x8xf32> to vector<32x1xf32>
    %19 = vector.extract_strided_slice %10 {offsets = [0, 0], sizes = [32, 16], strides = [1, 1]} : vector<32x32xf32> to vector<32x16xf32>
    %20 = vector.broadcast %18 : vector<32x1xf32> to vector<32x16xf32>
    %21 = arith.mulf %20, %19 : vector<32x16xf32>
    %22 = vector.extract_strided_slice %17 {offsets = [0, 1], sizes = [32, 1], strides = [1, 1]} : vector<32x8xf32> to vector<32x1xf32>
    %23 = vector.extract_strided_slice %10 {offsets = [0, 16], sizes = [32, 16], strides = [1, 1]} : vector<32x32xf32> to vector<32x16xf32>
    %24 = vector.broadcast %22 : vector<32x1xf32> to vector<32x16xf32>
    %25 = arith.mulf %24, %23 : vector<32x16xf32>
    %26 = tpu.concatenate %10, %21, %25 in 1 : vector<32x32xf32>, vector<32x16xf32>, vector<32x16xf32> -> vector<32x64xf32>
    %c0_13 = arith.constant 0 : index
    %c0_14 = arith.constant 0 : index
    %27 = vector.load %arg6[%c0_13, %c0_14] : memref<32x64xf32, #tpu.memory_space<vmem>>, vector<32x64xf32>
    tpu.vector_store %arg6[%c0_13, %c0_14], %26 {strides = array<i32>} : memref<32x64xf32, #tpu.memory_space<vmem>>, vector<32x64xf32>,
    return
  }
  func.func @transform_0(%arg0: i32) -> (i32, i32) {
    %c0_i32 = arith.constant 0 : i32
    %c0_i32_0 = arith.constant 0 : i32
    return %arg0, %c0_i32 : i32, i32
  }
  func.func @transform_1(%arg0: i32) -> (i32, i32) {
    %c0_i32 = arith.constant 0 : i32
    %c0_i32_0 = arith.constant 0 : i32
    %c0_i32_1 = arith.constant 0 : i32
    return %c0_i32, %c0_i32_0 : i32, i32
  }
  func.func @transform_2(%arg0: i32) -> (i32, i32) {
    %c0_i32 = arith.constant 0 : i32
    %c0_i32_0 = arith.constant 0 : i32
    %c0_i32_1 = arith.constant 0 : i32
    return %c0_i32, %c0_i32_0 : i32, i32
  }
  func.func @transform_3(%arg0: i32) -> (i32, i32) {
    %c0_i32 = arith.constant 0 : i32
    %c0_i32_0 = arith.constant 0 : i32
    %c0_i32_1 = arith.constant 0 : i32
    return %c0_i32, %c0_i32_0 : i32, i32
  }
  func.func @transform_4(%arg0: i32) -> (i32, i32) {
    %c0_i32 = arith.constant 0 : i32
    %c0_i32_0 = arith.constant 0 : i32
    return %arg0, %c0_i32 : i32, i32
  }
  func.func @transform_5(%arg0: i32) -> (i32, i32) {
    %c0_i32 = arith.constant 0 : i32
    %c0_i32_0 = arith.constant 0 : i32
    return %arg0, %c0_i32 : i32, i32
  }
}

</mosaic_0001>

<llo_original>
// kernel: tpu_custom_call.1
$region0: #{tpu_custom_call.1}
  #allocation0 [shape = 'u32[]', space=smem, size = 0x4, offset = 0x4, fixed_abs, tag = 'smem constant byte address 0x4 - core index']
  #allocation1 [shape = 'u32[144,128]{1,0:T(1,128)}', space=vmem, size = 0x12000, scoped, tag = 'internal scratch']
  %s0 = inlined_call_operand.vmem [shape: f32[64,32], index: 0, kind: input, shape index: {}]
  %s1 = inlined_call_operand.vmem [shape: f32[32,64], index: 1, kind: input, shape index: {}]
  %s2 = inlined_call_operand.vmem [shape: f32[1,64], index: 2, kind: input, shape index: {}]
  %s3 = inlined_call_operand.vmem [shape: f32[32,8], index: 3, kind: input, shape index: {}]
  %s4 = inlined_call_operand.vmem [shape: f32[64,32], index: 4, kind: output, shape index: {0}]
  %s5 = inlined_call_operand.hbm [shape: f32[64,64], index: 5, kind: output, shape index: {1}]
  %6 = xla_tuple %s4, %s5
  %s7 = sld [smem:[#allocation0]]
  $region57: #{tpu_custom_call.1} parent=0
    _
  %s9 = ssub.s32 1, %s7
  %s10 = scalar_select 0, %s9, %s7
  $region1: #{tpu_custom_call.1} parent=0
    #allocation2 [shape = 'u8[32768]{0}', space=vmem, size = 0x8000, scoped, tag = 'output window, operand 1']
    #allocation3 [shape = 's32[2]{0}', space=sflag, size = 0x8, scoped, tag = 'scoped memory for tpu_custom_call.1']
    %11 = vsyncpa [#allocation3], 0
    %s12 = scalar_lea.sflag [#allocation3], 1
    %13 = vsyncpa %s12, 0
    loop: start=0, step=1, limit=4
    $region2: #{tpu_custom_call.1} parent=1 // loop_pre_header
      _
    $region3: #{tpu_custom_call.1} parent=1 // loop_header
      %s15 = sphi 0, %s19
      %p16 = scmp.ge.s32.totalorder %s15, 4
      %s25 = sphi 0, %s27
      %s28 = sphi 0, %s25
      %s29 = sphi 0, %s28
      %s45 = sphi 0, %s29
      %s49 = sphi 0, %s49
      %s51 = sphi 0, %s49
      %s52 = sphi 0, %s51
      %s66 = sphi 0, %s52
      %s70 = sphi 0, %s70
      %s72 = sphi 0, %s70
      %s73 = sphi 0, %s72
      %s87 = sphi 0, %s73
      %s91 = sphi 0, %s91
      %s93 = sphi 0, %s91
      %s94 = sphi 0, %s93
      %s108 = sphi 0, %s94
      %s114 = sphi 0, %s116
      %s117 = sphi 0, %s114
      %s118 = sphi 0, %s117
      %s134 = sphi 0, %s118
      %s140 = sphi 0, %s142
      %s143 = sphi 0, %s140
      %s144 = sphi 0, %s143
      %s160 = sphi 0, %s144
    $region4: #{tpu_custom_call.1} parent=1 // loop_header_branch
      %18 = sbr.rel (%p16) target = $region8
    $region5: #{tpu_custom_call.1} parent=1 // loop_body
      %s20 = ssub.s32 %s15, 1
      %s21 = ssub.s32 %s15, 2
      %s22 = sadd.s32 %s15, 1
      %s23 = ssub.s32 %s15, %s22
      %p24 = scmp.eq.s32.totalorder %s23, 0
      %s26 = sadd.s32 %s25, 1
      %s27 = scalar_select %p24, %s25, %s26
      %p30 = pneg %p24
      %p31 = scmp.eq.s32.totalorder %s15, 1
      %p32 = por %p30, %p31
      %p33 = scmp.ne.s32.totalorder %s25, %s28
      %p34 = scmp.eq.s32.totalorder %s15, 0
      %p35 = por %p33, %p34
      %p36 = scmp.ne.s32.totalorder %s25, %s28
      %p37 = scmp.eq.s32.totalorder %s20, 1
      %p38 = por %p36, %p37
      %p39 = scmp.ne.s32.totalorder %s28, %s29
      %p40 = scmp.eq.s32.totalorder %s20, 0
      %p41 = por %p39, %p40
      %p42 = scmp.ne.s32.totalorder %s28, %s29
      %p43 = scmp.eq.s32.totalorder %s21, 1
      %p44 = por %p42, %p43
      %p46 = scmp.ne.s32.totalorder %s29, %s45
      %p47 = scmp.eq.s32.totalorder %s21, 0
      %p48 = por %p46, %p47
      %s50 = sadd.s32 %s49, 1
      %p53 = scmp.eq.s32.totalorder %s15, 1
      %p54 = scmp.ne.s32.totalorder %s49, %s51
      %p55 = scmp.eq.s32.totalorder %s15, 0
      %p56 = por %p54, %p55
      %p57 = scmp.ne.s32.totalorder %s49, %s51
      %p58 = scmp.eq.s32.totalorder %s20, 1
      %p59 = por %p57, %p58
      %p60 = scmp.ne.s32.totalorder %s51, %s52
      %p61 = scmp.eq.s32.totalorder %s20, 0
      %p62 = por %p60, %p61
      %p63 = scmp.ne.s32.totalorder %s51, %s52
      %p64 = scmp.eq.s32.totalorder %s21, 1
      %p65 = por %p63, %p64
      %p67 = scmp.ne.s32.totalorder %s52, %s66
      %p68 = scmp.eq.s32.totalorder %s21, 0
      %p69 = por %p67, %p68
      %s71 = sadd.s32 %s70, 1
      %p74 = scmp.eq.s32.totalorder %s15, 1
      %p75 = scmp.ne.s32.totalorder %s70, %s72
      %p76 = scmp.eq.s32.totalorder %s15, 0
      %p77 = por %p75, %p76
      %p78 = scmp.ne.s32.totalorder %s70, %s72
      %p79 = scmp.eq.s32.totalorder %s20, 1
      %p80 = por %p78, %p79
      %p81 = scmp.ne.s32.totalorder %s72, %s73
      %p82 = scmp.eq.s32.totalorder %s20, 0
      %p83 = por %p81, %p82
      %p84 = scmp.ne.s32.totalorder %s72, %s73
      %p85 = scmp.eq.s32.totalorder %s21, 1
      %p86 = por %p84, %p85
      %p88 = scmp.ne.s32.totalorder %s73, %s87
      %p89 = scmp.eq.s32.totalorder %s21, 0
      %p90 = por %p88, %p89
      %s92 = sadd.s32 %s91, 1
      %p95 = scmp.eq.s32.totalorder %s15, 1
      %p96 = scmp.ne.s32.totalorder %s91, %s93
      %p97 = scmp.eq.s32.totalorder %s15, 0
      %p98 = por %p96, %p97
      %p99 = scmp.ne.s32.totalorder %s91, %s93
      %p100 = scmp.eq.s32.totalorder %s20, 1
      %p101 = por %p99, %p100
      %p102 = scmp.ne.s32.totalorder %s93, %s94
      %p103 = scmp.eq.s32.totalorder %s20, 0
      %p104 = por %p102, %p103
      %p105 = scmp.ne.s32.totalorder %s93, %s94
      %p106 = scmp.eq.s32.totalorder %s21, 1
      %p107 = por %p105, %p106
      %p109 = scmp.ne.s32.totalorder %s94, %s108
      %p110 = scmp.eq.s32.totalorder %s21, 0
      %p111 = por %p109, %p110
      %s112 = ssub.s32 %s15, %s22
      %p113 = scmp.eq.s32.totalorder %s112, 0
      %s115 = sadd.s32 %s114, 1
      %s116 = scalar_select %p113, %s114, %s115
      %p119 = pneg %p113
      %p120 = scmp.eq.s32.totalorder %s15, 1
      %p121 = por %p119, %p120
      %p122 = scmp.ne.s32.totalorder %s114, %s117
      %p123 = scmp.eq.s32.totalorder %s15, 0
      %p124 = por %p122, %p123
      %p125 = scmp.ne.s32.totalorder %s114, %s117
      %p126 = scmp.eq.s32.totalorder %s20, 1
      %p127 = por %p125, %p126
      %p128 = scmp.ne.s32.totalorder %s117, %s118
      %p129 = scmp.eq.s32.totalorder %s20, 0
      %p130 = por %p128, %p129
      %p131 = scmp.ne.s32.totalorder %s117, %s118
      %p132 = scmp.eq.s32.totalorder %s21, 1
      %p133 = por %p131, %p132
      %p135 = scmp.ne.s32.totalorder %s118, %s134
      %p136 = scmp.eq.s32.totalorder %s21, 0
      %p137 = por %p135, %p136
      %s138 = ssub.s32 %s15, %s22
      %p139 = scmp.eq.s32.totalorder %s138, 0
      %s141 = sadd.s32 %s140, 1
      %s142 = scalar_select %p139, %s140, %s141
      %p145 = pneg %p139
      %p146 = scmp.eq.s32.totalorder %s15, 1
      %p147 = por %p145, %p146
      %p148 = scmp.ne.s32.totalorder %s140, %s143
      %p149 = scmp.eq.s32.totalorder %s15, 0
      %p150 = por %p148, %p149
      %p151 = scmp.ne.s32.totalorder %s140, %s143
      %p152 = scmp.eq.s32.totalorder %s20, 1
      %p153 = por %p151, %p152
      %p154 = scmp.ne.s32.totalorder %s143, %s144
      %p155 = scmp.eq.s32.totalorder %s20, 0
      %p156 = por %p154, %p155
      %p157 = scmp.ne.s32.totalorder %s143, %s144
      %p158 = scmp.eq.s32.totalorder %s21, 1
      %p159 = por %p157, %p158
      %p161 = scmp.ne.s32.totalorder %s144, %s160
      %p162 = scmp.eq.s32.totalorder %s21, 0
      %p163 = por %p161, %p162
      %p164 = scmp.le.s32.totalorder 1, %s15
      %p165 = scmp.lt.s32.totalorder %s15, 3
      %p166 = pnand %p164, %p165
      %p167 = pneg %p166
      // Predicated region
      $region9: #{tpu_custom_call.1} parent=5 // pred_check
        _
      $region10: #{tpu_custom_call.1} parent=5 // pred_check_branch
        %169 = sbr.rel (%p166) target = $region12
      $region11: #{tpu_custom_call.1} parent=5 // pred_region
        %s170 = ssub.s32 %s15, 1
        // Predicated region
        $region13: #{tpu_custom_call.1} parent=11 // pred_check
          %p171 = pneg %p62
        $region14: #{tpu_custom_call.1} parent=11 // pred_check_branch
          %173 = sbr.rel (%p171) target = $region16
        $region15: #{tpu_custom_call.1} parent=11 // pred_region
          _
        $region16: #{tpu_custom_call.1} parent=11 // pred_fallthru
          _
        // Predicated region
        $region17: #{tpu_custom_call.1} parent=11 // pred_check
          %p174 = pneg %p83
        $region18: #{tpu_custom_call.1} parent=11 // pred_check_branch
          %176 = sbr.rel (%p174) target = $region20
        $region19: #{tpu_custom_call.1} parent=11 // pred_region
          _
        $region20: #{tpu_custom_call.1} parent=11 // pred_fallthru
          _
        // Predicated region
        $region21: #{tpu_custom_call.1} parent=11 // pred_check
          %p177 = pneg %p104
        $region22: #{tpu_custom_call.1} parent=11 // pred_check_branch
          %179 = sbr.rel (%p177) target = $region24
        $region23: #{tpu_custom_call.1} parent=11 // pred_region
          _
        $region24: #{tpu_custom_call.1} parent=11 // pred_fallthru
          _
      $region12: #{tpu_custom_call.1} parent=5 // pred_fallthru
        _
      %p180 = scmp.lt.s32.totalorder %s15, 2
      // Predicated region
      $region25: #{tpu_custom_call.1} parent=5 // pred_check
        %p181 = pneg %p180
      $region26: #{tpu_custom_call.1} parent=5 // pred_check_branch
        %183 = sbr.rel (%p181) target = $region28
      $region27: #{tpu_custom_call.1} parent=5 // pred_region
        // Predicated region
        $region29: #{tpu_custom_call.1} parent=27 // pred_check
          %p184 = pneg %p35
        $region30: #{tpu_custom_call.1} parent=27 // pred_check_branch
          %186 = sbr.rel (%p184) target = $region32
        $region31: #{tpu_custom_call.1} parent=27 // pred_region
          %s187 = smul.u32 4, %s15
          %p188 = scmp.lt.s32.totalorder %s187, 7
          %s189 = scalar_select %p188, %s187, 7
          %s190 = smul.addr %s189, 8
          %s191 = scalar_lea.vmem %s0, %s190
          %s192 = smul.u32 4, %s15
        $region32: #{tpu_custom_call.1} parent=27 // pred_fallthru
          _
      $region28: #{tpu_custom_call.1} parent=5 // pred_fallthru
        _
      %p193 = scmp.le.s32.totalorder 1, %s15
      %p194 = scmp.lt.s32.totalorder %s15, 3
      %p195 = pnand %p193, %p194
      %p196 = pneg %p195
      // Predicated region
      $region33: #{tpu_custom_call.1} parent=5 // pred_check
        _
      $region34: #{tpu_custom_call.1} parent=5 // pred_check_branch
        %198 = sbr.rel (%p195) target = $region36
      $region35: #{tpu_custom_call.1} parent=5 // pred_region
        %s199 = ssub.s32 %s15, 1
        %s200 = smul.u32 4, %s20
        %p201 = scmp.lt.s32.totalorder %s200, 7
        %s202 = scalar_select %p201, %s200, 7
        %s203 = smul.addr %s202, 8
        %s204 = scalar_lea.vmem %s0, %s203
        %p205 = pneg %p41
        %p206 = pneg %p38
        %p207 = pneg %p62
        %p208 = pneg %p59
        %p209 = pneg %p83
        %p210 = pneg %p80
        %p211 = pneg %p104
        %p212 = pneg %p101
        %p213 = pneg %p130
        %p214 = pneg %p127
        %s215 = smul.u32 4, %s20
        %p216 = scmp.lt.s32.totalorder %s215, 7
        %s217 = scalar_select %p216, %s215, 7
        %s218 = smul.addr %s217, 8
        %s219 = scalar_lea.vmem %s4, %s218
        %p220 = pneg %p156
        %p221 = pneg %p153
        %s222 = sand.u32 %s143, 1
        %s223 = scalar_lea.sflag [#allocation3], %s222
        %s224 = sand.u32 %s143, 1
        %s225 = smul.addr %s224, 32
        %s226 = scalar_lea.vmem [#allocation2], %s225
        %s227 = smul.u32 4, %s20
        %p228 = scmp.lt.s32.totalorder %s227, 7
        %s229 = scalar_select %p228, %s227, 7
        %s230 = smul.addr %s229, 8
        %s231 = scalar_lea.vmem %s0, %s230
        %s232 = smul.u32 4, %s20
        %s233 = smul.u32 4, %s20
        %p234 = scmp.lt.s32.totalorder %s233, 7
        %s235 = scalar_select %p234, %s233, 7
        %s236 = smul.addr %s235, 8
        %s237 = scalar_lea.vmem %s4, %s236
        %s238 = smul.u32 4, %s20
        %s239 = smul.u32 4, %s20
        %v240 = vld [vmem:[%s231] sm:$0xff]
        %v241 = vld [vmem:[%s231 + $0x8] sm:$0xff]
        %v242 = vld [vmem:[%s231 + $0x10] sm:$0xff]
        %v243 = vld [vmem:[%s231 + $0x18] sm:$0xff]
        %v244 = vld [vmem:[%s1] sm:$0xff]
        %v245 = vld [vmem:[%s1 + $0x8] sm:$0xff]
        %v246 = vld [vmem:[%s1 + $0x10] sm:$0xff]
        %v247 = vld [vmem:[%s1 + $0x18] sm:$0xff]
        %v248 = vld [vmem:[%s2] sm:$0x1]
        %v250 = vlaneseq
        %v251 = vshrl.u32 %v250, 7
        %v252 = vsub.s32 0, %v251
        %v253 = vrot.slane %v248, %v252
        %vm255 = vcmask 261120
        %v257 = vsel %vm255, %v240, 0
        %v260 = vsel %vm255, %v241, 0
        %v263 = vsel %vm255, %v242, 0
        %v266 = vsel %vm255, %v243, 0
        %268 = vmatprep.subr.mxu0 0.0
        %269 = vmatpush1.msra.mxu0 0.0
        %270 = vmatprep.subr.mxu0 0.0
        %271 = vmatpush1.msra.mxu0 0.0
        %272 = vmatprep.subr.mxu0 0.0
        %273 = vmatpush1.msra.mxu0 0.0
        %274 = vmatprep.subr.mxu0 0.0
        %275 = vmatpush1.msra.mxu0 0.0
        %276 = vmatprep.subr.mxu0 0.0
        %277 = vmatpush1.msra.mxu0 0.0
        %278 = vmatprep.subr.mxu0 0.0
        %279 = vmatpush1.msra.mxu0 0.0
        %280 = vmatprep.subr.mxu0 0.0
        %281 = vmatpush1.msra.mxu0 0.0
        %282 = vmatprep.subr.mxu0 0.0
        %283 = vmatpush1.msra.mxu0 0.0
        %284 = vmatprep.subr.mxu0 0.0
        %285 = vmatpush1.msra.mxu0 0.0
        %286 = vmatprep.subr.mxu0 0.0
        %287 = vmatpush1.msra.mxu0 0.0
        %288 = vmatprep.subr.mxu0 0.0
        %289 = vmatpush1.msra.mxu0 0.0
        %290 = vmatprep.subr.mxu0 0.0
        %291 = vmatpush1.msra.mxu0 0.0
        %292 = vmatprep.subr.mxu0 0.0
        %293 = vmatpush1.msra.mxu0 %v247
        %294 = vmatprep.subr.mxu0 0.0
        %295 = vmatpush1.msra.mxu0 %v246
        %296 = vmatprep.subr.mxu0 0.0
        %297 = vmatpush1.msra.mxu0 %v245
        %298 = vmatprep.subr.mxu0 0.0
        %299 = vmatpush1.msra.mxu0 %v244
        %300 = vmatprep.subr.mxu0 0.0
        %301 = vmatpush2.msra.mxu0 0.0
        %302 = vmatprep.subr.mxu0 0.0
        %303 = vmatpush2.msra.mxu0 0.0
        %304 = vmatprep.subr.mxu0 0.0
        %305 = vmatpush2.msra.mxu0 0.0
        %306 = vmatprep.subr.mxu0 0.0
        %307 = vmatpush2.msra.mxu0 0.0
        %308 = vmatprep.subr.mxu0 0.0
        %309 = vmatpush2.msra.mxu0 0.0
        %310 = vmatprep.subr.mxu0 0.0
        %311 = vmatpush2.msra.mxu0 0.0
        %312 = vmatprep.subr.mxu0 0.0
        %313 = vmatpush2.msra.mxu0 0.0
        %314 = vmatprep.subr.mxu0 0.0
        %315 = vmatpush2.msra.mxu0 0.0
        %316 = vmatprep.subr.mxu0 0.0
        %317 = vmatpush2.msra.mxu0 0.0
        %318 = vmatprep.subr.mxu0 0.0
        %319 = vmatpush2.msra.mxu0 0.0
        %320 = vmatprep.subr.mxu0 0.0
        %321 = vmatpush2.msra.mxu0 0.0
        %322 = vmatprep.subr.mxu0 0.0
        %323 = vmatpush2.msra.mxu0 0.0
        %324 = vmatprep.subr.mxu0 0.0
        %325 = vmatpush2.msra.mxu0 0.0
        %326 = vmatprep.subr.mxu0 0.0
        %327 = vmatpush2.msra.mxu0 0.0
        %328 = vmatprep.subr.mxu0 0.0
        %329 = vmatpush2.msra.mxu0 0.0
        %330 = vmatprep.subr.mxu0 0.0
        %331 = vmatpush2.msra.mxu0 0.0
        %332 = vmatprep.mubr.f32.mxu0 0.0
        %333 = vmatmul.mubr.f32.gmra.mxu0 %v257
        %v334 = vpop.f32.mrf.mxu0
        %v335 = vadd.f32 %v253, %v334
        %v336 = vpop.f32.mrf.mxu0
        %337 = vmatprep.mubr.f32.mxu0 0.0
        %338 = vmatmul.mubr.f32.gmra.mxu0 %v260
        %v339 = vpop.f32.mrf.mxu0
        %v340 = vadd.f32 %v253, %v339
        %v341 = vpop.f32.mrf.mxu0
        %342 = vmatprep.mubr.f32.mxu0 0.0
        %343 = vmatmul.mubr.f32.gmra.mxu0 %v263
        %v344 = vpop.f32.mrf.mxu0
        %v345 = vadd.f32 %v253, %v344
        %v346 = vpop.f32.mrf.mxu0
        %347 = vmatprep.mubr.f32.mxu0 0.0
        %348 = vmatmul.mubr.f32.gmra.mxu0 %v266
        %v349 = vpop.f32.mrf.mxu0
        %v350 = vadd.f32 %v253, %v349
        %v351 = vpop.f32.mrf.mxu0
        %352 = vdwg.mxu0
        %v353 = vmax.f32 %v335, 0.0
        %v354 = vmax.f32 %v340, 0.0
        %v355 = vmax.f32 %v345, 0.0
        %v356 = vmax.f32 %v350, 0.0
        %357 = vst.msk [vmem:[%s237] sm:$0xff] %vm255, %v353
        %358 = vst.msk [vmem:[%s237 + $0x8] sm:$0xff] %vm255, %v354
        %359 = vst.msk [vmem:[%s237 + $0x10] sm:$0xff] %vm255, %v355
        %360 = vst.msk [vmem:[%s237 + $0x18] sm:$0xff] %vm255, %v356
        %v361 = vld [vmem:[%s3] sm:$0xff]
        %v362 = vld [vmem:[%s3 + $0x8] sm:$0xff]
        %v363 = vld [vmem:[%s3 + $0x10] sm:$0xff]
        %v364 = vld [vmem:[%s3 + $0x18] sm:$0xff]
        %369 = vrot.lane.b32.xlu0 %v353, 96
        %v370 = vpop.permute.xlu0 %369
        %371 = vrot.lane.b32.xlu0 %v354, 96
        %v372 = vpop.permute.xlu0 %371
        %373 = vrot.lane.b32.xlu0 %v355, 96
        %v374 = vpop.permute.xlu0 %373
        %375 = vrot.lane.b32.xlu0 %v356, 96
        %v376 = vpop.permute.xlu0 %375
        %v377 = vsel %vm255, %v370, 0
        %v379 = vsel %vm255, %v372, 0
        %v381 = vsel %vm255, %v374, 0
        %v383 = vsel %vm255, %v376, 0
        %385 = vmatprep.subr.mxu0 0.0
        %386 = vmatpush1.msra.mxu0 0.0
        %387 = vmatprep.subr.mxu0 0.0
        %388 = vmatpush1.msra.mxu0 0.0
        %389 = vmatprep.subr.mxu0 0.0
        %390 = vmatpush1.msra.mxu0 0.0
        %391 = vmatprep.subr.mxu0 0.0
        %392 = vmatpush1.msra.mxu0 0.0
        %393 = vmatprep.subr.mxu0 0.0
        %394 = vmatpush1.msra.mxu0 0.0
        %395 = vmatprep.subr.mxu0 0.0
        %396 = vmatpush1.msra.mxu0 0.0
        %397 = vmatprep.subr.mxu0 0.0
        %398 = vmatpush1.msra.mxu0 0.0
        %399 = vmatprep.subr.mxu0 0.0
        %400 = vmatpush1.msra.mxu0 0.0
        %401 = vmatprep.subr.mxu0 0.0
        %402 = vmatpush1.msra.mxu0 0.0
        %403 = vmatprep.subr.mxu0 0.0
        %404 = vmatpush1.msra.mxu0 0.0
        %405 = vmatprep.subr.mxu0 0.0
        %406 = vmatpush1.msra.mxu0 0.0
        %407 = vmatprep.subr.mxu0 0.0
        %408 = vmatpush1.msra.mxu0 0.0
        %409 = vmatprep.subr.mxu0 0.0
        %410 = vmatpush1.msra.mxu0 %v364
        %411 = vmatprep.subr.mxu0 0.0
        %412 = vmatpush1.msra.mxu0 %v363
        %413 = vmatprep.subr.mxu0 0.0
        %414 = vmatpush1.msra.mxu0 %v362
        %415 = vmatprep.subr.mxu0 0.0
        %416 = vmatpush1.msra.mxu0 %v361
        %417 = vmatprep.subr.mxu0 0.0
        %418 = vmatpush2.msra.mxu0 0.0
        %419 = vmatprep.subr.mxu0 0.0
        %420 = vmatpush2.msra.mxu0 0.0
        %421 = vmatprep.subr.mxu0 0.0
        %422 = vmatpush2.msra.mxu0 0.0
        %423 = vmatprep.subr.mxu0 0.0
        %424 = vmatpush2.msra.mxu0 0.0
        %425 = vmatprep.subr.mxu0 0.0
        %426 = vmatpush2.msra.mxu0 0.0
        %427 = vmatprep.subr.mxu0 0.0
        %428 = vmatpush2.msra.mxu0 0.0
        %429 = vmatprep.subr.mxu0 0.0
        %430 = vmatpush2.msra.mxu0 0.0
        %431 = vmatprep.subr.mxu0 0.0
        %432 = vmatpush2.msra.mxu0 0.0
        %433 = vmatprep.subr.mxu0 0.0
        %434 = vmatpush2.msra.mxu0 0.0
        %435 = vmatprep.subr.mxu0 0.0
        %436 = vmatpush2.msra.mxu0 0.0
        %437 = vmatprep.subr.mxu0 0.0
        %438 = vmatpush2.msra.mxu0 0.0
        %439 = vmatprep.subr.mxu0 0.0
        %440 = vmatpush2.msra.mxu0 0.0
        %441 = vmatprep.subr.mxu0 0.0
        %442 = vmatpush2.msra.mxu0 0.0
        %443 = vmatprep.subr.mxu0 0.0
        %444 = vmatpush2.msra.mxu0 0.0
        %445 = vmatprep.subr.mxu0 0.0
        %446 = vmatpush2.msra.mxu0 0.0
        %447 = vmatprep.subr.mxu0 0.0
        %448 = vmatpush2.msra.mxu0 0.0
        %449 = vmatprep.mubr.f32.mxu0 0.0
        %450 = vmatmul.mubr.f32.gmra.mxu0 %v377
        %v451 = vpop.f32.mrf.mxu0
        %v452 = vadd.f32 0.0, %v451
        %v453 = vpop.f32.mrf.mxu0
        %454 = vmatprep.mubr.f32.mxu0 0.0
        %455 = vmatmul.mubr.f32.gmra.mxu0 %v379
        %v456 = vpop.f32.mrf.mxu0
        %v457 = vadd.f32 0.0, %v456
        %v458 = vpop.f32.mrf.mxu0
        %459 = vmatprep.mubr.f32.mxu0 0.0
        %460 = vmatmul.mubr.f32.gmra.mxu0 %v381
        %v461 = vpop.f32.mrf.mxu0
        %v462 = vadd.f32 0.0, %v461
        %v463 = vpop.f32.mrf.mxu0
        %464 = vmatprep.mubr.f32.mxu0 0.0
        %465 = vmatmul.mubr.f32.gmra.mxu0 %v383
        %v466 = vpop.f32.mrf.mxu0
        %v467 = vadd.f32 0.0, %v466
        %v468 = vpop.f32.mrf.mxu0
        %469 = vdwg.mxu0
        %vm470 = vcmp.gt.f32.partialorder %v452, 0.0
        %vm471 = vcmp.gt.f32.partialorder %v457, 0.0
        %vm472 = vcmp.gt.f32.partialorder %v462, 0.0
        %vm473 = vcmp.gt.f32.partialorder %v467, 0.0
        %v474 = vmul.f32 %v452, 0.2
        %v475 = vmul.f32 %v457, 0.2
        %v476 = vmul.f32 %v462, 0.2
        %v477 = vmul.f32 %v467, 0.2
        %v478 = vsel %vm470, %v452, %v474
        %v479 = vsel %vm471, %v457, %v475
        %v480 = vsel %vm472, %v462, %v476
        %v481 = vsel %vm473, %v467, %v477
        %483 = vset.pattern.permute.xlu0 0
        %484 = vperm.xlu0 %483, %v478
        %v485 = vpop.permute.xlu0 %484
        %488 = vset.pattern.permute.xlu0 0
        %489 = vperm.xlu0 %488, %v479
        %v490 = vpop.permute.xlu0 %489
        %493 = vset.pattern.permute.xlu0 0
        %494 = vperm.xlu0 %493, %v480
        %v495 = vpop.permute.xlu0 %494
        %498 = vset.pattern.permute.xlu0 0
        %499 = vperm.xlu0 %498, %v481
        %v500 = vpop.permute.xlu0 %499
        %v502 = vmul.f32 %v485, %v353
        %v503 = vmul.f32 %v490, %v354
        %v504 = vmul.f32 %v495, %v355
        %v505 = vmul.f32 %v500, %v356
        %506 = vset.pattern.permute.xlu0 1
        %507 = vperm.xlu0 %506, %v478
        %v508 = vpop.permute.xlu0 %507
        %510 = vset.pattern.permute.xlu0 1
        %511 = vperm.xlu0 %510, %v479
        %v512 = vpop.permute.xlu0 %511
        %514 = vset.pattern.permute.xlu0 1
        %515 = vperm.xlu0 %514, %v480
        %v516 = vpop.permute.xlu0 %515
        %518 = vset.pattern.permute.xlu0 1
        %519 = vperm.xlu0 %518, %v481
        %v520 = vpop.permute.xlu0 %519
        %v522 = vmul.f32 %v508, %v353
        %v523 = vmul.f32 %v512, %v354
        %v524 = vmul.f32 %v516, %v355
        %v525 = vmul.f32 %v520, %v356
        %v530 = vsel %vm255, %v370, %v502
        %v531 = vsel %vm255, %v372, %v503
        %v532 = vsel %vm255, %v374, %v504
        %v533 = vsel %vm255, %v376, %v505
        %vm534 = vcmask 392192
        %v535 = vsel %vm534, %v530, %v522
        %v536 = vsel %vm534, %v531, %v523
        %v537 = vsel %vm534, %v532, %v524
        %v538 = vsel %vm534, %v533, %v525
        %vm539 = vcmask 523264
        %540 = vst.msk [vmem:[%s226] sm:$0xff] %vm539, %v535
        %541 = vst.msk [vmem:[%s226 + $0x8] sm:$0xff] %vm539, %v536
        %542 = vst.msk [vmem:[%s226 + $0x10] sm:$0xff] %vm539, %v537
        %543 = vst.msk [vmem:[%s226 + $0x18] sm:$0xff] %vm539, %v538
        %s544 = smul.u32 4, %s20
        %p545 = scmp.lt.s32.totalorder %s544, 7
        %s546 = scalar_select %p545, %s544, 7
        %s547 = smul.addr %s546, 8
        %s548 = scalar_lea.vmem %s4, %s547
        %s549 = sand.u32 %s143, 1
        %s550 = scalar_lea.sflag [#allocation3], %s549
        %s551 = sand.u32 %s143, 1
        %s552 = smul.addr %s551, 32
        %s553 = scalar_lea.vmem [#allocation2], %s552
        // Predicated region
        $region37: #{tpu_custom_call.1} parent=35 // pred_check
          %p554 = pneg %p127
        $region38: #{tpu_custom_call.1} parent=35 // pred_check_branch
          %556 = sbr.rel (%p554) target = $region40
        $region39: #{tpu_custom_call.1} parent=35 // pred_region
          %s557 = smul.u32 4, %s20
        $region40: #{tpu_custom_call.1} parent=35 // pred_fallthru
          _
        // Predicated region
        $region41: #{tpu_custom_call.1} parent=35 // pred_check
          %p558 = pneg %p153
        $region42: #{tpu_custom_call.1} parent=35 // pred_check_branch
          %560 = sbr.rel (%p558) target = $region44
        $region43: #{tpu_custom_call.1} parent=35 // pred_region
          %s561 = smul.u32 4, %s20
          %s563 = ssub.s32 512, 512
          %564 = vsyncadd %s550, %s563
          %s565 = smul.addr %s561, 128
          %s566 = scalar_lea.hbm %s5, %s565
          %s567 = sshll.u32 %s553, 4
          %s568 = int_to_ptr.vmem [resolvable:$true] %s567
          %573 = dma.vmem_to_hbm [thread:$0]  %s568, 512, %s566, %s550, 128, 128, 8
        $region44: #{tpu_custom_call.1} parent=35 // pred_fallthru
          _
      $region36: #{tpu_custom_call.1} parent=5 // pred_fallthru
        _
      %p574 = scmp.le.s32.totalorder 2, %s15
      // Predicated region
      $region45: #{tpu_custom_call.1} parent=5 // pred_check
        %p575 = pneg %p574
      $region46: #{tpu_custom_call.1} parent=5 // pred_check_branch
        %577 = sbr.rel (%p575) target = $region48
      $region47: #{tpu_custom_call.1} parent=5 // pred_region
        %s578 = ssub.s32 %s15, 2
        // Predicated region
        $region49: #{tpu_custom_call.1} parent=47 // pred_check
          %p579 = pneg %p133
        $region50: #{tpu_custom_call.1} parent=47 // pred_check_branch
          %581 = sbr.rel (%p579) target = $region52
        $region51: #{tpu_custom_call.1} parent=47 // pred_region
          %s582 = smul.u32 4, %s21
          %p583 = scmp.lt.s32.totalorder %s582, 7
          %s584 = scalar_select %p583, %s582, 7
          %s585 = smul.addr %s584, 8
          %s586 = scalar_lea.vmem %s4, %s585
        $region52: #{tpu_custom_call.1} parent=47 // pred_fallthru
          _
        // Predicated region
        $region53: #{tpu_custom_call.1} parent=47 // pred_check
          %p587 = pneg %p159
        $region54: #{tpu_custom_call.1} parent=47 // pred_check_branch
          %589 = sbr.rel (%p587) target = $region56
        $region55: #{tpu_custom_call.1} parent=47 // pred_region
          %s590 = sand.u32 %s144, 1
          %s591 = scalar_lea.sflag [#allocation3], %s590
          %s592 = sand.u32 %s144, 1
          %s593 = smul.addr %s592, 32
          %s594 = scalar_lea.vmem [#allocation2], %s593
          %595 = dma.done %s591, 512
        $region56: #{tpu_custom_call.1} parent=47 // pred_fallthru
          _
      $region48: #{tpu_custom_call.1} parent=5 // pred_fallthru
        _
    $region6: #{tpu_custom_call.1} parent=1 // loop_footer
      %s19 = sadd.s32 1, %s15
    $region7: #{tpu_custom_call.1} parent=1 // loop_footer_branch
      %14 = sbr.rel target = $region3
    $region8: #{tpu_custom_call.1} parent=1 // loop_exit
      _
    %596 = vsyncpa [#allocation3], 1
    %s597 = scalar_lea.sflag [#allocation3], 1
    %598 = vsyncpa %s597, 1

</llo_original>
